<compile_context>
chip_gen: v7x
topology: tpu7x:2x2x1
jax: 0.10.0
libtpu: 0.0.40
codegen_flags: <defaults>
</compile_context>

<pallas_src>
import functools

import jax
import jax.numpy as jnp
from jax.experimental import pallas as pl
from jax.experimental.pallas import tpu as pltpu


def _merge_norm_reduce_kernel(x_ref, ga_ref, gb_ref, ba_ref, bb_ref,
                              wa_ref, wb_ref, o_ref, *, eps, inv_n):
    """2x2 patch merge + LayerNorm(4C) + Linear(4C->Dout) for one row-block.

    x_ref : (tr, 2, Wo, 2C)  row-block; plane hh=0 holds channels [x0|x2],
                             plane hh=1 holds [x1|x3] (contiguous in HBM).
    ga/gb : (1, 2C)  LayerNorm gamma for plane-0 / plane-1 channels
    ba/bb : (1, 2C)  LayerNorm beta  for plane-0 / plane-1 channels
    wa/wb : (2C, Dout) reduction-weight rows for plane-0 / plane-1 channels
    o_ref : (tr*Wo, Dout)
    """
    v = x_ref[...].astype(jnp.float32)               # (tr, 2, Wo, 2C)
    tr, _, wo, c2 = v.shape
    # Wo % 8 == 0 is guaranteed by the wrapper, so these reshapes are pure
    # sublane merges of the f32 layout (no per-step relayout copy).
    v0 = v[:, 0, :, :].reshape(tr * wo, c2)
    v1 = v[:, 1, :, :].reshape(tr * wo, c2)

    # fused single-pass LayerNorm statistics over all 4C channels
    s = jnp.sum(v0, axis=-1, keepdims=True) + jnp.sum(v1, axis=-1, keepdims=True)
    ss = (jnp.sum(v0 * v0, axis=-1, keepdims=True)
          + jnp.sum(v1 * v1, axis=-1, keepdims=True))
    mean = s * inv_n
    var = jnp.maximum(ss * inv_n - mean * mean, 0.0)
    rstd = jax.lax.rsqrt(var + eps)                  # EUP slot, effectively free

    y0 = (v0 - mean) * rstd * ga_ref[...].astype(jnp.float32) \
        + ba_ref[...].astype(jnp.float32)
    y1 = (v1 - mean) * rstd * gb_ref[...].astype(jnp.float32) \
        + bb_ref[...].astype(jnp.float32)

    acc = jnp.dot(y0.astype(wa_ref.dtype), wa_ref[...],
                  preferred_element_type=jnp.float32)
    acc = acc + jnp.dot(y1.astype(wb_ref.dtype), wb_ref[...],
                        preferred_element_type=jnp.float32)
    o_ref[...] = acc.astype(o_ref.dtype)


def _tpu_generation():
    """Best-effort chip query -> (physical VMEM bytes, #TCs/device, default tokens/step)."""
    kind = ""
    try:
        dev = jax.devices()[0]
        if dev.platform == "tpu":
            kind = dev.device_kind.lower()
    except Exception:
        pass
    if "v7" in kind:
        return 64 << 20, 2, 1024          # v7x: 64 MiB VMEM, 2 TC/chip
    if "v4" in kind or "v5p" in kind:
        return 128 << 20, 2, 2048         # megacore
    return 128 << 20, 1, 2048             # v5e / v6e / unknown: single TC


def patch_merging_2d(x, gamma, beta, weight, *, eps=1e-5, block_tokens=None,
                     matmul_dtype=None):
    """x: (B, H, W, C) channel-last.  weight: (Dout, 4C) as in nn.Linear.

    Returns (B, ceil(H/2), ceil(W/2), Dout) with dtype == x.dtype."""
    B, H, W, C = x.shape
    D_in = 4 * C
    D_out = weight.shape[0]

    # --- padding:
    #  (a) odd H/W -> even with zeros (matches F.pad in the reference module)
    #  (b) extra W so Wo % 8 == 0: guarantees the in-kernel reshape is a pure
    #      reinterpretation; padded tokens are per-token independent under
    #      LN+Linear and are cropped from the output below.
    Ho_true = (H + (H % 2)) // 2
    Wo_true = (W + (W % 2)) // 2
    pad_h = H % 2
    pad_w = (W % 2) + 2 * ((-Wo_true) % 8)
    if pad_h or pad_w:
        x = jnp.pad(x, ((0, 0), (0, pad_h), (0, pad_w), (0, 0)))
    B, H, W, C = x.shape
    Ho, Wo = H // 2, W // 2
    R = B * Ho          # output row-groups (each covers 2 input rows)
    N = R * Wo          # total output tokens

    # free, contiguous reshape; the activation is read from HBM exactly once
    xr = x.reshape(R, 2, Wo, 2 * C)

    # --- permute the tiny params host-side to match the in-memory channel order
    #     plane hh=0 = [x0 | x2] -> orig channels [0:C] ++ [2C:3C]
    #     plane hh=1 = [x1 | x3] -> orig channels [C:2C] ++ [3C:4C]
    w_dtype = weight.dtype if matmul_dtype is None else matmul_dtype
    W_t = weight.T.astype(w_dtype)                            # (4C, Dout)
    g = gamma.reshape(-1)
    b = beta.reshape(-1)
    ga = jnp.concatenate([g[0:C], g[2 * C:3 * C]]).reshape(1, 2 * C)
    gb = jnp.concatenate([g[C:2 * C], g[3 * C:4 * C]]).reshape(1, 2 * C)
    ba = jnp.concatenate([b[0:C], b[2 * C:3 * C]]).reshape(1, 2 * C)
    bb = jnp.concatenate([b[C:2 * C], b[3 * C:4 * C]]).reshape(1, 2 * C)
    wa = jnp.concatenate([W_t[0:C], W_t[2 * C:3 * C]], axis=0)      # (2C, Dout)
    wb = jnp.concatenate([W_t[C:2 * C], W_t[3 * C:4 * C]], axis=0)  # (2C, Dout)

    # --- generation-aware tile sizing / VMEM budgeting ---------------------
    phys_vmem, num_tc, default_tokens = _tpu_generation()
    if block_tokens is None:
        block_tokens = default_tokens

    itemsize = jnp.dtype(x.dtype).itemsize
    w_itemsize = jnp.dtype(w_dtype).itemsize
    p_itemsize = jnp.dtype(gamma.dtype).itemsize

    vmem_limit = int(phys_vmem) * 3 // 4          # 96 MiB on v5e/v6e, 48 on v7x
    # invariant params, conservatively counted as double-buffered
    param_bytes = 2 * (2 * (2 * C) * D_out * w_itemsize + 4 * (2 * C) * p_itemsize)
    # per-token cost: double-buffered in/out blocks + f32 temporaries
    # (v0, v1, their squares, y0, y1 ~ 6*(2C) f32; acc + store ~ 2*D_out f32)
    per_token = (2 * (2 * (2 * C)) * itemsize          # input block, 2 buffers
                 + 2 * D_out * itemsize                # output block, 2 buffers
                 + (6 * (2 * C) + 2 * D_out) * 4)      # f32 intermediates
    budget = max(vmem_limit * 6 // 10 - param_bytes, per_token * max(Wo, 8))
    max_tokens = max(Wo, budget // per_token)
    tokens = int(min(block_tokens, max_tokens))

    tr_cap = max(1, min(tokens // max(Wo, 1), R))
    # Only force a multi-block grid when the device actually has >1 TensorCore
    # (v7x / megacore); on v5e / v6e a single big block avoids extra step
    # overhead.  cdiv-balanced blocks keep both cores equally busy.
    grid_min = num_tc if (num_tc > 1 and R >= num_tc) else 1
    grid_r = max(grid_min, pl.cdiv(R, tr_cap))
    tr = pl.cdiv(R, grid_r)                 # balanced; tr <= tr_cap
    grid_r = pl.cdiv(R, tr)                 # ragged tail (if any) is masked on
                                            # writeback; garbage rows are per-
                                            # token independent so never leak.

    # invariant operands: single-buffer them once they are big enough to matter
    single_buf_params = ((2 * C) * D_out * w_itemsize) >= (1 << 20)

    def _const_spec(shape):
        if single_buf_params:
            return pl.BlockSpec(shape, lambda i: (0, 0),
                                pipeline_mode=pl.Buffered(1))
        return pl.BlockSpec(shape, lambda i: (0, 0))

    cost = pl.CostEstimate(
        flops=2 * N * D_in * D_out,
        transcendentals=N,                                   # one rsqrt / token
        bytes_accessed=int(xr.size * itemsize + N * D_out * itemsize
                           + 2 * (2 * C) * D_out * w_itemsize
                           + 4 * (2 * C) * p_itemsize),
    )

    out = pl.pallas_call(
        functools.partial(_merge_norm_reduce_kernel, eps=eps, inv_n=1.0 / D_in),
        out_shape=jax.ShapeDtypeStruct((N, D_out), x.dtype),
        grid_spec=pltpu.PrefetchScalarGridSpec(
            num_scalar_prefetch=0,
            grid=(grid_r,),
            in_specs=[
                pl.BlockSpec((tr, 2, Wo, 2 * C), lambda i: (i, 0, 0, 0)),
                _const_spec((1, 2 * C)),
                _const_spec((1, 2 * C)),
                _const_spec((1, 2 * C)),
                _const_spec((1, 2 * C)),
                _const_spec((2 * C, D_out)),
                _const_spec((2 * C, D_out)),
            ],
            out_specs=pl.BlockSpec((tr * Wo, D_out), lambda i: (i, 0)),
        ),
        compiler_params=pltpu.CompilerParams(
            dimension_semantics=("parallel",),
            vmem_limit_bytes=vmem_limit),
        cost_estimate=cost,
    )(xr, ga, gb, ba, bb, wa, wb)

    out = out.reshape(B, Ho, Wo, D_out)
    if Wo != Wo_true:                        # crop alignment padding (free-ish,
        out = out[:, :, :Wo_true, :]         # only when W/2 wasn't 8-aligned)
    return out


def _reference(x, gamma, beta, weight, eps=1e-5):
    """Pure-JAX reference mirroring the PyTorch module (channel-last path)."""
    B, H, W, C = x.shape
    if (H % 2) or (W % 2):
        x = jnp.pad(x, ((0, 0), (0, H % 2), (0, W % 2), (0, 0)))
    x0 = x[:, 0::2, 0::2, :]
    x1 = x[:, 1::2, 0::2, :]
    x2 = x[:, 0::2, 1::2, :]
    x3 = x[:, 1::2, 1::2, :]
    xm = jnp.concatenate([x0, x1, x2, x3], axis=-1).astype(jnp.float32)
    mean = jnp.mean(xm, axis=-1, keepdims=True)
    var = jnp.mean((xm - mean) ** 2, axis=-1, keepdims=True)
    xn = (xm - mean) * jax.lax.rsqrt(var + eps)
    xn = xn * gamma + beta
    return xn @ weight.T


if __name__ == "__main__":
    key = jax.random.PRNGKey(0)
    B, H, W, C = 2, 16, 16, 4            # dim=4 -> 4*dim=16 in, 2*dim=8 out
    dim = C
    d_in, d_out = 4 * dim, 2 * dim

    k1, k2, k3, k4 = jax.random.split(key, 4)
    x = jax.random.normal(k1, (B, H, W, C), dtype=jnp.float32)
    # nn.Linear(4*dim, 2*dim, bias=False) weight: (out, in)
    weight = jax.random.normal(k2, (d_out, d_in), dtype=jnp.float32) * 0.1
    # nn.LayerNorm(4*dim) params
    gamma = 1.0 + 0.05 * jax.random.normal(k3, (d_in,), dtype=jnp.float32)
    beta = 0.05 * jax.random.normal(k4, (d_in,), dtype=jnp.float32)

    fn = jax.jit(patch_merging_2d)
    out = jax.block_until_ready(fn(x, gamma, beta, weight))

    ref = _reference(x, gamma, beta, weight)
    assert out.shape == (B, H // 2, W // 2, d_out), out.shape
    err = float(jnp.max(jnp.abs(out - ref)))
    assert jnp.allclose(out, ref, atol=1e-4, rtol=1e-4), err

    print("KERNEL_OK")
</pallas_src>

<mosaic_0001>
module attributes {stable_mosaic.version = 11 : i64} {
  func.func @_merge_norm_reduce_kernel(%arg0: i32, %arg1: memref<16x2x8x8xf32, #tpu.memory_space<vmem>>, %arg2: memref<1x8xf32, #tpu.memory_space<vmem>>, %arg3: memref<1x8xf32, #tpu.memory_space<vmem>>, %arg4: memref<1x8xf32, #tpu.memory_space<vmem>>, %arg5: memref<1x8xf32, #tpu.memory_space<vmem>>, %arg6: memref<8x8xf32, #tpu.memory_space<vmem>>, %arg7: memref<8x8xf32, #tpu.memory_space<vmem>>, %arg8: memref<128x8xf32, #tpu.memory_space<vmem>>) attributes {dimension_semantics = [#tpu.dimension_semantics<parallel>], iteration_bounds = array<i64: 1>, scalar_prefetch = 0 : i64, scratch_operands = 0 : i64, tpu.core_type = #tpu.core_type<tc>, window_params = [{transform_indices = @transform_0, window_bounds = array<i64: 16, 2, 8, 8>}, {pipeline_mode = #tpu.pipeline_mode<synchronous>, transform_indices = @transform_1, window_bounds = array<i64: 1, 8>}, {pipeline_mode = #tpu.pipeline_mode<synchronous>, transform_indices = @transform_2, window_bounds = array<i64: 1, 8>}, {pipeline_mode = #tpu.pipeline_mode<synchronous>, transform_indices = @transform_3, window_bounds = array<i64: 1, 8>}, {pipeline_mode = #tpu.pipeline_mode<synchronous>, transform_indices = @transform_4, window_bounds = array<i64: 1, 8>}, {pipeline_mode = #tpu.pipeline_mode<synchronous>, transform_indices = @transform_5, window_bounds = array<i64: 8, 8>}, {pipeline_mode = #tpu.pipeline_mode<synchronous>, transform_indices = @transform_6, window_bounds = array<i64: 8, 8>}, {transform_indices = @transform_7, window_bounds = array<i64: 128, 8>}]} {
    %c0 = arith.constant 0 : index
    %c0_0 = arith.constant 0 : index
    %c0_1 = arith.constant 0 : index
    %c0_2 = arith.constant 0 : index
    %0 = vector.load %arg1[%c0, %c0_0, %c0_1, %c0_2] : memref<16x2x8x8xf32, #tpu.memory_space<vmem>>, vector<16x2x8x8xf32>
    %1 = vector.extract_strided_slice %0 {offsets = [0, 0, 0, 0], sizes = [16, 1, 8, 8], strides = [1, 1, 1, 1]} : vector<16x2x8x8xf32> to vector<16x1x8x8xf32>
    %2 = vector.shape_cast %1 : vector<16x1x8x8xf32> to vector<16x8x8xf32>
    %3 = vector.shape_cast %2 : vector<16x8x8xf32> to vector<128x8xf32>
    %4 = vector.extract_strided_slice %0 {offsets = [0, 1, 0, 0], sizes = [16, 1, 8, 8], strides = [1, 1, 1, 1]} : vector<16x2x8x8xf32> to vector<16x1x8x8xf32>
    %5 = vector.shape_cast %4 : vector<16x1x8x8xf32> to vector<16x8x8xf32>
    %6 = vector.shape_cast %5 : vector<16x8x8xf32> to vector<128x8xf32>
    %cst = arith.constant dense<0.000000e+00> : vector<128xf32>
    %7 = vector.multi_reduction <add>, %3, %cst [1] : vector<128x8xf32> to vector<128xf32>
    %8 = vector.shape_cast %7 : vector<128xf32> to vector<128x1xf32>
    %cst_3 = arith.constant dense<0.000000e+00> : vector<128xf32>
    %9 = vector.multi_reduction <add>, %6, %cst_3 [1] : vector<128x8xf32> to vector<128xf32>
    %10 = vector.shape_cast %9 : vector<128xf32> to vector<128x1xf32>
    %11 = arith.addf %8, %10 : vector<128x1xf32>
    %12 = arith.mulf %3, %3 : vector<128x8xf32>
    %cst_4 = arith.constant dense<0.000000e+00> : vector<128xf32>
    %13 = vector.multi_reduction <add>, %12, %cst_4 [1] : vector<128x8xf32> to vector<128xf32>
    %14 = vector.shape_cast %13 : vector<128xf32> to vector<128x1xf32>
    %15 = arith.mulf %6, %6 : vector<128x8xf32>
    %cst_5 = arith.constant dense<0.000000e+00> : vector<128xf32>
    %16 = vector.multi_reduction <add>, %15, %cst_5 [1] : vector<128x8xf32> to vector<128xf32>
    %17 = vector.shape_cast %16 : vector<128xf32> to vector<128x1xf32>
    %18 = arith.addf %14, %17 : vector<128x1xf32>
    %cst_6 = arith.constant 6.250000e-02 : f32
    %19 = vector.broadcast %cst_6 : f32 to vector<128x1xf32>
    %20 = arith.mulf %11, %19 : vector<128x1xf32>
    %cst_7 = arith.constant 6.250000e-02 : f32
    %21 = vector.broadcast %cst_7 : f32 to vector<128x1xf32>
    %22 = arith.mulf %18, %21 : vector<128x1xf32>
    %23 = arith.mulf %20, %20 : vector<128x1xf32>
    %24 = arith.subf %22, %23 : vector<128x1xf32>
    %cst_8 = arith.constant 0.000000e+00 : f32
    %25 = vector.broadcast %cst_8 : f32 to vector<128x1xf32>
    %26 = arith.maximumf %24, %25 : vector<128x1xf32>
    %cst_9 = arith.constant 9.99999974E-6 : f32
    %27 = vector.broadcast %cst_9 : f32 to vector<128x1xf32>
    %28 = arith.addf %26, %27 : vector<128x1xf32>
    %29 = math.rsqrt %28 : vector<128x1xf32>
    %30 = vector.broadcast %20 : vector<128x1xf32> to vector<128x8xf32>
    %31 = arith.subf %3, %30 : vector<128x8xf32>
    %32 = vector.broadcast %29 : vector<128x1xf32> to vector<128x8xf32>
    %33 = arith.mulf %31, %32 : vector<128x8xf32>
    %c0_10 = arith.constant 0 : index
    %c0_11 = arith.constant 0 : index
    %34 = vector.load %arg2[%c0_10, %c0_11] : memref<1x8xf32, #tpu.memory_space<vmem>>, vector<1x8xf32>
    %35 = vector.broadcast %34 : vector<1x8xf32> to vector<128x8xf32>
    %36 = arith.mulf %33, %35 : vector<128x8xf32>
    %c0_12 = arith.constant 0 : index
    %c0_13 = arith.constant 0 : index
    %37 = vector.load %arg4[%c0_12, %c0_13] : memref<1x8xf32, #tpu.memory_space<vmem>>, vector<1x8xf32>
    %38 = vector.broadcast %37 : vector<1x8xf32> to vector<128x8xf32>
    %39 = arith.addf %36, %38 : vector<128x8xf32>
    %40 = vector.broadcast %20 : vector<128x1xf32> to vector<128x8xf32>
    %41 = arith.subf %6, %40 : vector<128x8xf32>
    %42 = vector.broadcast %29 : vector<128x1xf32> to vector<128x8xf32>
    %43 = arith.mulf %41, %42 : vector<128x8xf32>
    %c0_14 = arith.constant 0 : index
    %c0_15 = arith.constant 0 : index
    %44 = vector.load %arg3[%c0_14, %c0_15] : memref<1x8xf32, #tpu.memory_space<vmem>>, vector<1x8xf32>
    %45 = vector.broadcast %44 : vector<1x8xf32> to vector<128x8xf32>
    %46 = arith.mulf %43, %45 : vector<128x8xf32>
    %c0_16 = arith.constant 0 : index
    %c0_17 = arith.constant 0 : index
    %47 = vector.load %arg5[%c0_16, %c0_17] : memref<1x8xf32, #tpu.memory_space<vmem>>, vector<1x8xf32>
    %48 = vector.broadcast %47 : vector<1x8xf32> to vector<128x8xf32>
    %49 = arith.addf %46, %48 : vector<128x8xf32>
    %c0_18 = arith.constant 0 : index
    %c0_19 = arith.constant 0 : index
    %50 = vector.load %arg6[%c0_18, %c0_19] : memref<8x8xf32, #tpu.memory_space<vmem>>, vector<8x8xf32>
    %cst_20 = arith.constant dense<0.000000e+00> : vector<128x8xf32>
    %51 = tpu.matmul %39, %50, %cst_20 {dimension_numbers = #tpu.dot_dimension_numbers<[1], [0], [0], [1], [0, 0, 1, 1], [], []>} : vector<128x8xf32>, vector<8x8xf32>, vector<128x8xf32> -> vector<128x8xf32>
    %c0_21 = arith.constant 0 : index
    %c0_22 = arith.constant 0 : index
    %52 = vector.load %arg7[%c0_21, %c0_22] : memref<8x8xf32, #tpu.memory_space<vmem>>, vector<8x8xf32>
    %cst_23 = arith.constant dense<0.000000e+00> : vector<128x8xf32>
    %53 = tpu.matmul %49, %52, %cst_23 {dimension_numbers = #tpu.dot_dimension_numbers<[1], [0], [0], [1], [0, 0, 1, 1], [], []>} : vector<128x8xf32>, vector<8x8xf32>, vector<128x8xf32> -> vector<128x8xf32>
    %54 = arith.addf %51, %53 : vector<128x8xf32>
    %c0_24 = arith.constant 0 : index
    %c0_25 = arith.constant 0 : index
    %55 = vector.load %arg8[%c0_24, %c0_25] : memref<128x8xf32, #tpu.memory_space<vmem>>, vector<128x8xf32>
    tpu.vector_store %arg8[%c0_24, %c0_25], %54 {strides = array<i32>} : memref<128x8xf32, #tpu.memory_space<vmem>>, vector<128x8xf32>,
    return
  }
  func.func @transform_0(%arg0: i32) -> (i32, i32, i32, i32) {
    %c0_i32 = arith.constant 0 : i32
    %c0_i32_0 = arith.constant 0 : i32
    %c0_i32_1 = arith.constant 0 : i32
    %c0_i32_2 = arith.constant 0 : i32
    return %arg0, %c0_i32, %c0_i32_0, %c0_i32_1 : i32, i32, i32, i32
  }
  func.func @transform_1(%arg0: i32) -> (i32, i32) {
    %c0_i32 = arith.constant 0 : i32
    %c0_i32_0 = arith.constant 0 : i32
    %c0_i32_1 = arith.constant 0 : i32
    return %c0_i32, %c0_i32_0 : i32, i32
  }
  func.func @transform_2(%arg0: i32) -> (i32, i32) {
    %c0_i32 = arith.constant 0 : i32
    %c0_i32_0 = arith.constant 0 : i32
    %c0_i32_1 = arith.constant 0 : i32
    return %c0_i32, %c0_i32_0 : i32, i32
  }
  func.func @transform_3(%arg0: i32) -> (i32, i32) {
    %c0_i32 = arith.constant 0 : i32
    %c0_i32_0 = arith.constant 0 : i32
    %c0_i32_1 = arith.constant 0 : i32
    return %c0_i32, %c0_i32_0 : i32, i32
  }
  func.func @transform_4(%arg0: i32) -> (i32, i32) {
    %c0_i32 = arith.constant 0 : i32
    %c0_i32_0 = arith.constant 0 : i32
    %c0_i32_1 = arith.constant 0 : i32
    return %c0_i32, %c0_i32_0 : i32, i32
  }
  func.func @transform_5(%arg0: i32) -> (i32, i32) {
    %c0_i32 = arith.constant 0 : i32
    %c0_i32_0 = arith.constant 0 : i32
    %c0_i32_1 = arith.constant 0 : i32
    return %c0_i32, %c0_i32_0 : i32, i32
  }
  func.func @transform_6(%arg0: i32) -> (i32, i32) {
    %c0_i32 = arith.constant 0 : i32
    %c0_i32_0 = arith.constant 0 : i32
    %c0_i32_1 = arith.constant 0 : i32
    return %c0_i32, %c0_i32_0 : i32, i32
  }
  func.func @transform_7(%arg0: i32) -> (i32, i32) {
    %c0_i32 = arith.constant 0 : i32
    %c0_i32_0 = arith.constant 0 : i32
    return %arg0, %c0_i32 : i32, i32
  }
}

</mosaic_0001>

<llo_original>
// kernel: patch_merging_2d.1
$region0: #{patch_merging_2d.1}
  #allocation0 [shape = 'u32[]', space=smem, size = 0x4, offset = 0x4, fixed_abs, tag = 'smem constant byte address 0x4 - core index']
  #allocation1 [shape = 'u32[144,128]{1,0:T(1,128)}', space=vmem, size = 0x12000, scoped, tag = 'internal scratch']
  %s0 = inlined_call_operand.hbm [shape: f32[16,2,8,8], index: 0, kind: input, shape index: {}]
  %s1 = inlined_call_operand.hbm [shape: f32[1,8], index: 1, kind: input, shape index: {}]
  %s2 = inlined_call_operand.hbm [shape: f32[1,8], index: 2, kind: input, shape index: {}]
  %s3 = inlined_call_operand.hbm [shape: f32[1,8], index: 3, kind: input, shape index: {}]
  %s4 = inlined_call_operand.hbm [shape: f32[1,8], index: 4, kind: input, shape index: {}]
  %s5 = inlined_call_operand.hbm [shape: f32[8,8], index: 5, kind: input, shape index: {}]
  %s6 = inlined_call_operand.hbm [shape: f32[8,8], index: 6, kind: input, shape index: {}]
  %s7 = inlined_call_operand.hbm [shape: f32[128,8], index: 7, kind: output, shape index: {}]
  %s8 = sld [smem:[#allocation0]]
  $region66: #{patch_merging_2d.1} parent=0
    _
  %s10 = ssub.s32 1, %s8
  %s11 = scalar_select 0, %s10, %s8
  $region1: #{patch_merging_2d.1} parent=0
    #allocation2 [shape = 'u8[131072]{0}', space=vmem, size = 0x20000, scoped, tag = 'input window, operand 0, single buffered']
    #allocation3 [shape = 's32[1]{0}', space=sflag, size = 0x4, scoped, tag = 'scoped memory for patch_merging_2d.1']
    #allocation4 [shape = 's32[1]{0}', space=sflag, size = 0x4, scoped, tag = 'scoped memory for patch_merging_2d.1']
    #allocation5 [shape = 'u8[512]{0}', space=vmem, size = 0x400, scoped, tag = 'input window, operand 1, single buffered']
    #allocation6 [shape = 's32[1]{0}', space=sflag, size = 0x4, scoped, tag = 'scoped memory for patch_merging_2d.1']
    #allocation7 [shape = 'u8[512]{0}', space=vmem, size = 0x400, scoped, tag = 'input window, operand 2, single buffered']
    #allocation8 [shape = 'u8[512]{0}', space=vmem, size = 0x400, scoped, tag = 'input window, operand 3, single buffered']
    #allocation9 [shape = 's32[1]{0}', space=sflag, size = 0x4, scoped, tag = 'scoped memory for patch_merging_2d.1']
    #allocation10 [shape = 'u8[512]{0}', space=vmem, size = 0x400, scoped, tag = 'input window, operand 4, single buffered']
    #allocation11 [shape = 'u8[4096]{0}', space=vmem, size = 0x1000, scoped, tag = 'input window, operand 5, single buffered']
    #allocation12 [shape = 's32[1]{0}', space=sflag, size = 0x4, scoped, tag = 'scoped memory for patch_merging_2d.1']
    #allocation13 [shape = 'u8[4096]{0}', space=vmem, size = 0x1000, scoped, tag = 'input window, operand 6, single buffered']
    #allocation14 [shape = 'u8[65536]{0}', space=vmem, size = 0x10000, scoped, tag = 'output window, operand 0, single buffered']
    %12 = vsyncpa [#allocation3], 0
    %13 = vsyncpa [#allocation6], 0
    %14 = vsyncpa [#allocation9], 0
    %15 = vsyncpa [#allocation12], 0
    %16 = vsyncpa [#allocation4], 0
    // Predicated region
    $region2: #{patch_merging_2d.1} parent=1 // pred_check
      _
    $region3: #{patch_merging_2d.1} parent=1 // pred_check_branch
      %18 = sbr.rel (0) target = $region5
    $region4: #{patch_merging_2d.1} parent=1 // pred_region
      %s20 = ssub.s32 4096, 4096
      %21 = vsyncadd [#allocation3], %s20
      %s22 = sshll.u32 [#allocation2], 4
      %s23 = int_to_ptr.vmem [resolvable:$true] %s22
      %28 = dma.hbm_to_vmem [thread:$0]  %s0, 4096, %s23, [#allocation3], 128, 128, 8
    $region5: #{patch_merging_2d.1} parent=1 // pred_fallthru
      _
    // Predicated region
    $region6: #{patch_merging_2d.1} parent=1 // pred_check
      _
    $region7: #{patch_merging_2d.1} parent=1 // pred_check_branch
      %30 = sbr.rel (0) target = $region9
    $region8: #{patch_merging_2d.1} parent=1 // pred_region
      %s32 = ssub.s32 16, 16
      %33 = vsyncadd [#allocation6], %s32
      %s35 = sshll.u32 [#allocation5], 4
      %s36 = int_to_ptr.vmem [resolvable:$true] %s35
      %38 = dma.hbm_to_vmem [thread:$0]  %s1, 16, %s36, [#allocation6]
    $region9: #{patch_merging_2d.1} parent=1 // pred_fallthru
      _
    // Predicated region
    $region10: #{patch_merging_2d.1} parent=1 // pred_check
      _
    $region11: #{patch_merging_2d.1} parent=1 // pred_check_branch
      %40 = sbr.rel (0) target = $region13
    $region12: #{patch_merging_2d.1} parent=1 // pred_region
      %s42 = ssub.s32 16, 16
      %43 = vsyncadd [#allocation6], %s42
      %s45 = sshll.u32 [#allocation7], 4
      %s46 = int_to_ptr.vmem [resolvable:$true] %s45
      %48 = dma.hbm_to_vmem [thread:$0]  %s2, 16, %s46, [#allocation6]
    $region13: #{patch_merging_2d.1} parent=1 // pred_fallthru
      _
    // Predicated region
    $region14: #{patch_merging_2d.1} parent=1 // pred_check
      _
    $region15: #{patch_merging_2d.1} parent=1 // pred_check_branch
      %50 = sbr.rel (0) target = $region17
    $region16: #{patch_merging_2d.1} parent=1 // pred_region
      %s52 = ssub.s32 16, 16
      %53 = vsyncadd [#allocation9], %s52
      %s55 = sshll.u32 [#allocation8], 4
      %s56 = int_to_ptr.vmem [resolvable:$true] %s55
      %58 = dma.hbm_to_vmem [thread:$0]  %s3, 16, %s56, [#allocation9]
    $region17: #{patch_merging_2d.1} parent=1 // pred_fallthru
      _
    // Predicated region
    $region18: #{patch_merging_2d.1} parent=1 // pred_check
      _
    $region19: #{patch_merging_2d.1} parent=1 // pred_check_branch
      %60 = sbr.rel (0) target = $region21
    $region20: #{patch_merging_2d.1} parent=1 // pred_region
      %s62 = ssub.s32 16, 16
      %63 = vsyncadd [#allocation9], %s62
      %s65 = sshll.u32 [#allocation10], 4
      %s66 = int_to_ptr.vmem [resolvable:$true] %s65
      %68 = dma.hbm_to_vmem [thread:$0]  %s4, 16, %s66, [#allocation9]
    $region21: #{patch_merging_2d.1} parent=1 // pred_fallthru
      _
    // Predicated region
    $region22: #{patch_merging_2d.1} parent=1 // pred_check
      _
    $region23: #{patch_merging_2d.1} parent=1 // pred_check_branch
      %70 = sbr.rel (0) target = $region25
    $region24: #{patch_merging_2d.1} parent=1 // pred_region
      %s72 = ssub.s32 128, 128
      %73 = vsyncadd [#allocation12], %s72
      %s75 = sshll.u32 [#allocation11], 4
      %s76 = int_to_ptr.vmem [resolvable:$true] %s75
      %78 = dma.hbm_to_vmem [thread:$0]  %s5, 128, %s76, [#allocation12]
    $region25: #{patch_merging_2d.1} parent=1 // pred_fallthru
      _
    // Predicated region
    $region26: #{patch_merging_2d.1} parent=1 // pred_check
      _
    $region27: #{patch_merging_2d.1} parent=1 // pred_check_branch
      %80 = sbr.rel (0) target = $region29
    $region28: #{patch_merging_2d.1} parent=1 // pred_region
      %s82 = ssub.s32 128, 128
      %83 = vsyncadd [#allocation12], %s82
      %s85 = sshll.u32 [#allocation13], 4
      %s86 = int_to_ptr.vmem [resolvable:$true] %s85
      %88 = dma.hbm_to_vmem [thread:$0]  %s6, 128, %s86, [#allocation12]
    $region29: #{patch_merging_2d.1} parent=1 // pred_fallthru
      _
    // Predicated region
    $region30: #{patch_merging_2d.1} parent=1 // pred_check
      _
    $region31: #{patch_merging_2d.1} parent=1 // pred_check_branch
      %90 = sbr.rel (0) target = $region33
    $region32: #{patch_merging_2d.1} parent=1 // pred_region
      %91 = dma.done [#allocation3], 4096
    $region33: #{patch_merging_2d.1} parent=1 // pred_fallthru
      _
    // Predicated region
    $region34: #{patch_merging_2d.1} parent=1 // pred_check
      _
    $region35: #{patch_merging_2d.1} parent=1 // pred_check_branch
      %93 = sbr.rel (0) target = $region37
    $region36: #{patch_merging_2d.1} parent=1 // pred_region
      %94 = dma.done [#allocation6], 16
    $region37: #{patch_merging_2d.1} parent=1 // pred_fallthru
      _
    // Predicated region
    $region38: #{patch_merging_2d.1} parent=1 // pred_check
      _
    $region39: #{patch_merging_2d.1} parent=1 // pred_check_branch
      %96 = sbr.rel (0) target = $region41
    $region40: #{patch_merging_2d.1} parent=1 // pred_region
      %97 = dma.done [#allocation6], 16
    $region41: #{patch_merging_2d.1} parent=1 // pred_fallthru
      _
    // Predicated region
    $region42: #{patch_merging_2d.1} parent=1 // pred_check
      _
    $region43: #{patch_merging_2d.1} parent=1 // pred_check_branch
      %99 = sbr.rel (0) target = $region45
    $region44: #{patch_merging_2d.1} parent=1 // pred_region
      %100 = dma.done [#allocation9], 16
    $region45: #{patch_merging_2d.1} parent=1 // pred_fallthru
      _
    // Predicated region
    $region46: #{patch_merging_2d.1} parent=1 // pred_check
      _
    $region47: #{patch_merging_2d.1} parent=1 // pred_check_branch
      %102 = sbr.rel (0) target = $region49
    $region48: #{patch_merging_2d.1} parent=1 // pred_region
      %103 = dma.done [#allocation9], 16
    $region49: #{patch_merging_2d.1} parent=1 // pred_fallthru
      _
    // Predicated region
    $region50: #{patch_merging_2d.1} parent=1 // pred_check
      _
    $region51: #{patch_merging_2d.1} parent=1 // pred_check_branch
      %105 = sbr.rel (0) target = $region53
    $region52: #{patch_merging_2d.1} parent=1 // pred_region
      %106 = dma.done [#allocation12], 128
    $region53: #{patch_merging_2d.1} parent=1 // pred_fallthru
      _
    // Predicated region
    $region54: #{patch_merging_2d.1} parent=1 // pred_check
      _
    $region55: #{patch_merging_2d.1} parent=1 // pred_check_branch
      %108 = sbr.rel (0) target = $region57
    $region56: #{patch_merging_2d.1} parent=1 // pred_region
      %109 = dma.done [#allocation12], 128
    $region57: #{patch_merging_2d.1} parent=1 // pred_fallthru
      _
    %v110 = vld [vmem:[#allocation2] sm:$0xff]
    %v111 = vld [vmem:[#allocation2 + $0x8] sm:$0xff]
    %v112 = vld [vmem:[#allocation2 + $0x10] sm:$0xff]
    %v113 = vld [vmem:[#allocation2 + $0x18] sm:$0xff]
    %v114 = vld [vmem:[#allocation2 + $0x20] sm:$0xff]
    %v115 = vld [vmem:[#allocation2 + $0x28] sm:$0xff]
    %v116 = vld [vmem:[#allocation2 + $0x30] sm:$0xff]
    %v117 = vld [vmem:[#allocation2 + $0x38] sm:$0xff]
    %v118 = vld [vmem:[#allocation2 + $0x40] sm:$0xff]
    %v119 = vld [vmem:[#allocation2 + $0x48] sm:$0xff]
    %v120 = vld [vmem:[#allocation2 + $0x50] sm:$0xff]
    %v121 = vld [vmem:[#allocation2 + $0x58] sm:$0xff]
    %v122 = vld [vmem:[#allocation2 + $0x60] sm:$0xff]
    %v123 = vld [vmem:[#allocation2 + $0x68] sm:$0xff]
    %v124 = vld [vmem:[#allocation2 + $0x70] sm:$0xff]
    %v125 = vld [vmem:[#allocation2 + $0x78] sm:$0xff]
    %v126 = vld [vmem:[#allocation2 + $0x80] sm:$0xff]
    %v127 = vld [vmem:[#allocation2 + $0x88] sm:$0xff]
    %v128 = vld [vmem:[#allocation2 + $0x90] sm:$0xff]
    %v129 = vld [vmem:[#allocation2 + $0x98] sm:$0xff]
    %v130 = vld [vmem:[#allocation2 + $0xa0] sm:$0xff]
    %v131 = vld [vmem:[#allocation2 + $0xa8] sm:$0xff]
    %v132 = vld [vmem:[#allocation2 + $0xb0] sm:$0xff]
    %v133 = vld [vmem:[#allocation2 + $0xb8] sm:$0xff]
    %v134 = vld [vmem:[#allocation2 + $0xc0] sm:$0xff]
    %v135 = vld [vmem:[#allocation2 + $0xc8] sm:$0xff]
    %v136 = vld [vmem:[#allocation2 + $0xd0] sm:$0xff]
    %v137 = vld [vmem:[#allocation2 + $0xd8] sm:$0xff]
    %v138 = vld [vmem:[#allocation2 + $0xe0] sm:$0xff]
    %v139 = vld [vmem:[#allocation2 + $0xe8] sm:$0xff]
    %v140 = vld [vmem:[#allocation2 + $0xf0] sm:$0xff]
    %v141 = vld [vmem:[#allocation2 + $0xf8] sm:$0xff]
    %vm142 = vcmask 64512
    %v143 = vsel %vm142, %v110, 0.0
    %144 = vadd.xlane.f32.xlu0 %v143
    %v145 = vpop.xlane.xlu0 %144
    %v146 = vsel %vm142, %v112, 0.0
    %147 = vadd.xlane.f32.xlu0 %v146
    %v148 = vpop.xlane.xlu0 %147
    %v149 = vsel %vm142, %v114, 0.0
    %150 = vadd.xlane.f32.xlu0 %v149
    %v151 = vpop.xlane.xlu0 %150
    %v152 = vsel %vm142, %v116, 0.0
    %153 = vadd.xlane.f32.xlu0 %v152
    %v154 = vpop.xlane.xlu0 %153
    %v155 = vsel %vm142, %v118, 0.0
    %156 = vadd.xlane.f32.xlu0 %v155
    %v157 = vpop.xlane.xlu0 %156
    %v158 = vsel %vm142, %v120, 0.0
    %159 = vadd.xlane.f32.xlu0 %v158
    %v160 = vpop.xlane.xlu0 %159
    %v161 = vsel %vm142, %v122, 0.0
    %162 = vadd.xlane.f32.xlu0 %v161
    %v163 = vpop.xlane.xlu0 %162
    %v164 = vsel %vm142, %v124, 0.0
    %165 = vadd.xlane.f32.xlu0 %v164
    %v166 = vpop.xlane.xlu0 %165
    %v167 = vsel %vm142, %v126, 0.0
    %168 = vadd.xlane.f32.xlu0 %v167
    %v169 = vpop.xlane.xlu0 %168
    %v170 = vsel %vm142, %v128, 0.0
    %171 = vadd.xlane.f32.xlu0 %v170
    %v172 = vpop.xlane.xlu0 %171
    %v173 = vsel %vm142, %v130, 0.0
    %174 = vadd.xlane.f32.xlu0 %v173
    %v175 = vpop.xlane.xlu0 %174
    %v176 = vsel %vm142, %v132, 0.0
    %177 = vadd.xlane.f32.xlu0 %v176
    %v178 = vpop.xlane.xlu0 %177
    %v179 = vsel %vm142, %v134, 0.0
    %180 = vadd.xlane.f32.xlu0 %v179
    %v181 = vpop.xlane.xlu0 %180
    %v182 = vsel %vm142, %v136, 0.0
    %183 = vadd.xlane.f32.xlu0 %v182
    %v184 = vpop.xlane.xlu0 %183
    %v185 = vsel %vm142, %v138, 0.0
    %186 = vadd.xlane.f32.xlu0 %v185
    %v187 = vpop.xlane.xlu0 %186
    %v188 = vsel %vm142, %v140, 0.0
    %189 = vadd.xlane.f32.xlu0 %v188
    %v190 = vpop.xlane.xlu0 %189
    %v191 = vsel %vm142, %v111, 0.0
    %192 = vadd.xlane.f32.xlu0 %v191
    %v193 = vpop.xlane.xlu0 %192
    %v194 = vsel %vm142, %v113, 0.0
    %195 = vadd.xlane.f32.xlu0 %v194
    %v196 = vpop.xlane.xlu0 %195
    %v197 = vsel %vm142, %v115, 0.0
    %198 = vadd.xlane.f32.xlu0 %v197
    %v199 = vpop.xlane.xlu0 %198
    %v200 = vsel %vm142, %v117, 0.0
    %201 = vadd.xlane.f32.xlu0 %v200
    %v202 = vpop.xlane.xlu0 %201
    %v203 = vsel %vm142, %v119, 0.0
    %204 = vadd.xlane.f32.xlu0 %v203
    %v205 = vpop.xlane.xlu0 %204
    %v206 = vsel %vm142, %v121, 0.0
    %207 = vadd.xlane.f32.xlu0 %v206
    %v208 = vpop.xlane.xlu0 %207
    %v209 = vsel %vm142, %v123, 0.0
    %210 = vadd.xlane.f32.xlu0 %v209
    %v211 = vpop.xlane.xlu0 %210
    %v212 = vsel %vm142, %v125, 0.0
    %213 = vadd.xlane.f32.xlu0 %v212
    %v214 = vpop.xlane.xlu0 %213
    %v215 = vsel %vm142, %v127, 0.0
    %216 = vadd.xlane.f32.xlu0 %v215
    %v217 = vpop.xlane.xlu0 %216
    %v218 = vsel %vm142, %v129, 0.0
    %219 = vadd.xlane.f32.xlu0 %v218
    %v220 = vpop.xlane.xlu0 %219
    %v221 = vsel %vm142, %v131, 0.0
    %222 = vadd.xlane.f32.xlu0 %v221
    %v223 = vpop.xlane.xlu0 %222
    %v224 = vsel %vm142, %v133, 0.0
    %225 = vadd.xlane.f32.xlu0 %v224
    %v226 = vpop.xlane.xlu0 %225
    %v227 = vsel %vm142, %v135, 0.0
    %228 = vadd.xlane.f32.xlu0 %v227
    %v229 = vpop.xlane.xlu0 %228
    %v230 = vsel %vm142, %v137, 0.0
    %231 = vadd.xlane.f32.xlu0 %v230
    %v232 = vpop.xlane.xlu0 %231
    %v233 = vsel %vm142, %v139, 0.0
    %234 = vadd.xlane.f32.xlu0 %v233
    %v235 = vpop.xlane.xlu0 %234
    %v236 = vsel %vm142, %v141, 0.0
    %237 = vadd.xlane.f32.xlu0 %v236
    %v238 = vpop.xlane.xlu0 %237
    %v239 = vadd.f32 %v145, %v193
    %v240 = vadd.f32 %v148, %v196
    %v241 = vadd.f32 %v151, %v199
    %v242 = vadd.f32 %v154, %v202
    %v243 = vadd.f32 %v157, %v205
    %v244 = vadd.f32 %v160, %v208
    %v245 = vadd.f32 %v163, %v211
    %v246 = vadd.f32 %v166, %v214
    %v247 = vadd.f32 %v169, %v217
    %v248 = vadd.f32 %v172, %v220
    %v249 = vadd.f32 %v175, %v223
    %v250 = vadd.f32 %v178, %v226
    %v251 = vadd.f32 %v181, %v229
    %v252 = vadd.f32 %v184, %v232
    %v253 = vadd.f32 %v187, %v235
    %v254 = vadd.f32 %v190, %v238
    %v255 = vmul.f32 %v110, %v110
    %v256 = vmul.f32 %v112, %v112
    %v257 = vmul.f32 %v114, %v114
    %v258 = vmul.f32 %v116, %v116
    %v259 = vmul.f32 %v118, %v118
    %v260 = vmul.f32 %v120, %v120
    %v261 = vmul.f32 %v122, %v122
    %v262 = vmul.f32 %v124, %v124
    %v263 = vmul.f32 %v126, %v126
    %v264 = vmul.f32 %v128, %v128
    %v265 = vmul.f32 %v130, %v130
    %v266 = vmul.f32 %v132, %v132
    %v267 = vmul.f32 %v134, %v134
    %v268 = vmul.f32 %v136, %v136
    %v269 = vmul.f32 %v138, %v138
    %v270 = vmul.f32 %v140, %v140
    %v271 = vsel %vm142, %v255, 0.0
    %272 = vadd.xlane.f32.xlu0 %v271
    %v273 = vpop.xlane.xlu0 %272
    %v274 = vsel %vm142, %v256, 0.0
    %275 = vadd.xlane.f32.xlu0 %v274
    %v276 = vpop.xlane.xlu0 %275
    %v277 = vsel %vm142, %v257, 0.0
    %278 = vadd.xlane.f32.xlu0 %v277
    %v279 = vpop.xlane.xlu0 %278
    %v280 = vsel %vm142, %v258, 0.0
    %281 = vadd.xlane.f32.xlu0 %v280
    %v282 = vpop.xlane.xlu0 %281
    %v283 = vsel %vm142, %v259, 0.0
    %284 = vadd.xlane.f32.xlu0 %v283
    %v285 = vpop.xlane.xlu0 %284
    %v286 = vsel %vm142, %v260, 0.0
    %287 = vadd.xlane.f32.xlu0 %v286
    %v288 = vpop.xlane.xlu0 %287
    %v289 = vsel %vm142, %v261, 0.0
    %290 = vadd.xlane.f32.xlu0 %v289
    %v291 = vpop.xlane.xlu0 %290
    %v292 = vsel %vm142, %v262, 0.0
    %293 = vadd.xlane.f32.xlu0 %v292
    %v294 = vpop.xlane.xlu0 %293
    %v295 = vsel %vm142, %v263, 0.0
    %296 = vadd.xlane.f32.xlu0 %v295
    %v297 = vpop.xlane.xlu0 %296
    %v298 = vsel %vm142, %v264, 0.0
    %299 = vadd.xlane.f32.xlu0 %v298
    %v300 = vpop.xlane.xlu0 %299
    %v301 = vsel %vm142, %v265, 0.0
    %302 = vadd.xlane.f32.xlu0 %v301
    %v303 = vpop.xlane.xlu0 %302
    %v304 = vsel %vm142, %v266, 0.0
    %305 = vadd.xlane.f32.xlu0 %v304
    %v306 = vpop.xlane.xlu0 %305
    %v307 = vsel %vm142, %v267, 0.0
    %308 = vadd.xlane.f32.xlu0 %v307
    %v309 = vpop.xlane.xlu0 %308
    %v310 = vsel %vm142, %v268, 0.0
    %311 = vadd.xlane.f32.xlu0 %v310
    %v312 = vpop.xlane.xlu0 %311
    %v313 = vsel %vm142, %v269, 0.0
    %314 = vadd.xlane.f32.xlu0 %v313
    %v315 = vpop.xlane.xlu0 %314
    %v316 = vsel %vm142, %v270, 0.0
    %317 = vadd.xlane.f32.xlu0 %v316
    %v318 = vpop.xlane.xlu0 %317
    %v319 = vmul.f32 %v111, %v111
    %v320 = vmul.f32 %v113, %v113
    %v321 = vmul.f32 %v115, %v115
    %v322 = vmul.f32 %v117, %v117
    %v323 = vmul.f32 %v119, %v119
    %v324 = vmul.f32 %v121, %v121
    %v325 = vmul.f32 %v123, %v123
    %v326 = vmul.f32 %v125, %v125
    %v327 = vmul.f32 %v127, %v127
    %v328 = vmul.f32 %v129, %v129
    %v329 = vmul.f32 %v131, %v131
    %v330 = vmul.f32 %v133, %v133
    %v331 = vmul.f32 %v135, %v135
    %v332 = vmul.f32 %v137, %v137
    %v333 = vmul.f32 %v139, %v139
    %v334 = vmul.f32 %v141, %v141
    %v335 = vsel %vm142, %v319, 0.0
    %336 = vadd.xlane.f32.xlu0 %v335
    %v337 = vpop.xlane.xlu0 %336
    %v338 = vsel %vm142, %v320, 0.0
    %339 = vadd.xlane.f32.xlu0 %v338
    %v340 = vpop.xlane.xlu0 %339
    %v341 = vsel %vm142, %v321, 0.0
    %342 = vadd.xlane.f32.xlu0 %v341
    %v343 = vpop.xlane.xlu0 %342
    %v344 = vsel %vm142, %v322, 0.0
    %345 = vadd.xlane.f32.xlu0 %v344
    %v346 = vpop.xlane.xlu0 %345
    %v347 = vsel %vm142, %v323, 0.0
    %348 = vadd.xlane.f32.xlu0 %v347
    %v349 = vpop.xlane.xlu0 %348
    %v350 = vsel %vm142, %v324, 0.0
    %351 = vadd.xlane.f32.xlu0 %v350
    %v352 = vpop.xlane.xlu0 %351
    %v353 = vsel %vm142, %v325, 0.0
    %354 = vadd.xlane.f32.xlu0 %v353
    %v355 = vpop.xlane.xlu0 %354
    %v356 = vsel %vm142, %v326, 0.0
    %357 = vadd.xlane.f32.xlu0 %v356
    %v358 = vpop.xlane.xlu0 %357
    %v359 = vsel %vm142, %v327, 0.0
    %360 = vadd.xlane.f32.xlu0 %v359
    %v361 = vpop.xlane.xlu0 %360
    %v362 = vsel %vm142, %v328, 0.0
    %363 = vadd.xlane.f32.xlu0 %v362
    %v364 = vpop.xlane.xlu0 %363
    %v365 = vsel %vm142, %v329, 0.0
    %366 = vadd.xlane.f32.xlu0 %v365
    %v367 = vpop.xlane.xlu0 %366
    %v368 = vsel %vm142, %v330, 0.0
    %369 = vadd.xlane.f32.xlu0 %v368
    %v370 = vpop.xlane.xlu0 %369
    %v371 = vsel %vm142, %v331, 0.0
    %372 = vadd.xlane.f32.xlu0 %v371
    %v373 = vpop.xlane.xlu0 %372
    %v374 = vsel %vm142, %v332, 0.0
    %375 = vadd.xlane.f32.xlu0 %v374
    %v376 = vpop.xlane.xlu0 %375
    %v377 = vsel %vm142, %v333, 0.0
    %378 = vadd.xlane.f32.xlu0 %v377
    %v379 = vpop.xlane.xlu0 %378
    %v380 = vsel %vm142, %v334, 0.0
    %381 = vadd.xlane.f32.xlu0 %v380
    %v382 = vpop.xlane.xlu0 %381
    %v383 = vadd.f32 %v273, %v337
    %v384 = vadd.f32 %v276, %v340
    %v385 = vadd.f32 %v279, %v343
    %v386 = vadd.f32 %v282, %v346
    %v387 = vadd.f32 %v285, %v349
    %v388 = vadd.f32 %v288, %v352
    %v389 = vadd.f32 %v291, %v355
    %v390 = vadd.f32 %v294, %v358
    %v391 = vadd.f32 %v297, %v361
    %v392 = vadd.f32 %v300, %v364
    %v393 = vadd.f32 %v303, %v367
    %v394 = vadd.f32 %v306, %v370
    %v395 = vadd.f32 %v309, %v373
    %v396 = vadd.f32 %v312, %v376
    %v397 = vadd.f32 %v315, %v379
    %v398 = vadd.f32 %v318, %v382
    %v399 = vmul.f32 %v239, 0.0625
    %v400 = vmul.f32 %v240, 0.0625
    %v401 = vmul.f32 %v241, 0.0625
    %v402 = vmul.f32 %v242, 0.0625
    %v403 = vmul.f32 %v243, 0.0625
    %v404 = vmul.f32 %v244, 0.0625
    %v405 = vmul.f32 %v245, 0.0625
    %v406 = vmul.f32 %v246, 0.0625
    %v407 = vmul.f32 %v247, 0.0625
    %v408 = vmul.f32 %v248, 0.0625
    %v409 = vmul.f32 %v249, 0.0625
    %v410 = vmul.f32 %v250, 0.0625
    %v411 = vmul.f32 %v251, 0.0625
    %v412 = vmul.f32 %v252, 0.0625
    %v413 = vmul.f32 %v253, 0.0625
    %v414 = vmul.f32 %v254, 0.0625
    %v415 = vmul.f32 %v383, 0.0625
    %v416 = vmul.f32 %v384, 0.0625
    %v417 = vmul.f32 %v385, 0.0625
    %v418 = vmul.f32 %v386, 0.0625
    %v419 = vmul.f32 %v387, 0.0625
    %v420 = vmul.f32 %v388, 0.0625
    %v421 = vmul.f32 %v389, 0.0625
    %v422 = vmul.f32 %v390, 0.0625
    %v423 = vmul.f32 %v391, 0.0625
    %v424 = vmul.f32 %v392, 0.0625
    %v425 = vmul.f32 %v393, 0.0625
    %v426 = vmul.f32 %v394, 0.0625
    %v427 = vmul.f32 %v395, 0.0625
    %v428 = vmul.f32 %v396, 0.0625
    %v429 = vmul.f32 %v397, 0.0625
    %v430 = vmul.f32 %v398, 0.0625
    %v431 = vmul.f32 %v399, %v399
    %v432 = vmul.f32 %v400, %v400
    %v433 = vmul.f32 %v401, %v401
    %v434 = vmul.f32 %v402, %v402
    %v435 = vmul.f32 %v403, %v403
    %v436 = vmul.f32 %v404, %v404
    %v437 = vmul.f32 %v405, %v405
    %v438 = vmul.f32 %v406, %v406
    %v439 = vmul.f32 %v407, %v407
    %v440 = vmul.f32 %v408, %v408
    %v441 = vmul.f32 %v409, %v409
    %v442 = vmul.f32 %v410, %v410
    %v443 = vmul.f32 %v411, %v411
    %v444 = vmul.f32 %v412, %v412
    %v445 = vmul.f32 %v413, %v413
    %v446 = vmul.f32 %v414, %v414
    %v447 = vsub.f32 %v415, %v431
    %v448 = vsub.f32 %v416, %v432
    %v449 = vsub.f32 %v417, %v433
    %v450 = vsub.f32 %v418, %v434
    %v451 = vsub.f32 %v419, %v435
    %v452 = vsub.f32 %v420, %v436
    %v453 = vsub.f32 %v421, %v437
    %v454 = vsub.f32 %v422, %v438
    %v455 = vsub.f32 %v423, %v439
    %v456 = vsub.f32 %v424, %v440
    %v457 = vsub.f32 %v425, %v441
    %v458 = vsub.f32 %v426, %v442
    %v459 = vsub.f32 %v427, %v443
    %v460 = vsub.f32 %v428, %v444
    %v461 = vsub.f32 %v429, %v445
    %v462 = vsub.f32 %v430, %v446
    %v463 = vmax.f32 %v447, 0.0
    %v464 = vmax.f32 %v448, 0.0
    %v465 = vmax.f32 %v449, 0.0
    %v466 = vmax.f32 %v450, 0.0
    %v467 = vmax.f32 %v451, 0.0
    %v468 = vmax.f32 %v452, 0.0
    %v469 = vmax.f32 %v453, 0.0
    %v470 = vmax.f32 %v454, 0.0
    %v471 = vmax.f32 %v455, 0.0
    %v472 = vmax.f32 %v456, 0.0
    %v473 = vmax.f32 %v457, 0.0
    %v474 = vmax.f32 %v458, 0.0
    %v475 = vmax.f32 %v459, 0.0
    %v476 = vmax.f32 %v460, 0.0
    %v477 = vmax.f32 %v461, 0.0
    %v478 = vmax.f32 %v462, 0.0
    %v479 = vadd.f32 %v463, 1e-05
    %v480 = vadd.f32 %v464, 1e-05
    %v481 = vadd.f32 %v465, 1e-05
    %v482 = vadd.f32 %v466, 1e-05
    %v483 = vadd.f32 %v467, 1e-05
    %v484 = vadd.f32 %v468, 1e-05
    %v485 = vadd.f32 %v469, 1e-05
    %v486 = vadd.f32 %v470, 1e-05
    %v487 = vadd.f32 %v471, 1e-05
    %v488 = vadd.f32 %v472, 1e-05
    %v489 = vadd.f32 %v473, 1e-05
    %v490 = vadd.f32 %v474, 1e-05
    %v491 = vadd.f32 %v475, 1e-05
    %v492 = vadd.f32 %v476, 1e-05
    %v493 = vadd.f32 %v477, 1e-05
    %v494 = vadd.f32 %v478, 1e-05
    %v495 = vrsqrt.pop %v479
    %v496 = vrsqrt.pop %v480
    %v497 = vrsqrt.pop %v481
    %v498 = vrsqrt.pop %v482
    %v499 = vrsqrt.pop %v483
    %v500 = vrsqrt.pop %v484
    %v501 = vrsqrt.pop %v485
    %v502 = vrsqrt.pop %v486
    %v503 = vrsqrt.pop %v487
    %v504 = vrsqrt.pop %v488
    %v505 = vrsqrt.pop %v489
    %v506 = vrsqrt.pop %v490
    %v507 = vrsqrt.pop %v491
    %v508 = vrsqrt.pop %v492
    %v509 = vrsqrt.pop %v493
    %v510 = vrsqrt.pop %v494
    %v511 = vsub.f32 %v110, %v399
    %v512 = vsub.f32 %v112, %v400
    %v513 = vsub.f32 %v114, %v401
    %v514 = vsub.f32 %v116, %v402
    %v515 = vsub.f32 %v118, %v403
    %v516 = vsub.f32 %v120, %v404
    %v517 = vsub.f32 %v122, %v405
    %v518 = vsub.f32 %v124, %v406
    %v519 = vsub.f32 %v126, %v407
    %v520 = vsub.f32 %v128, %v408
    %v521 = vsub.f32 %v130, %v409
    %v522 = vsub.f32 %v132, %v410
    %v523 = vsub.f32 %v134, %v411
    %v524 = vsub.f32 %v136, %v412
    %v525 = vsub.f32 %v138, %v413
    %v526 = vsub.f32 %v140, %v414
    %v527 = vmul.f32 %v511, %v495
    %v528 = vmul.f32 %v512, %v496
    %v529 = vmul.f32 %v513, %v497
    %v530 = vmul.f32 %v514, %v498
    %v531 = vmul.f32 %v515, %v499
    %v532 = vmul.f32 %v516, %v500
    %v533 = vmul.f32 %v517, %v501
    %v534 = vmul.f32 %v518, %v502
    %v535 = vmul.f32 %v519, %v503
    %v536 = vmul.f32 %v520, %v504
    %v537 = vmul.f32 %v521, %v505
    %v538 = vmul.f32 %v522, %v506
    %v539 = vmul.f32 %v523, %v507
    %v540 = vmul.f32 %v524, %v508
    %v541 = vmul.f32 %v525, %v509
    %v542 = vmul.f32 %v526, %v510
    %v543 = vld [vmem:[#allocation5] sm:$0x1]
    %v545 = vlaneseq
    %v546 = vshrl.u32 %v545, 7
    %v547 = vsub.s32 0, %v546
    %v548 = vrot.slane %v543, %v547
    %v550 = vmul.f32 %v527, %v548
    %v551 = vmul.f32 %v528, %v548
    %v552 = vmul.f32 %v529, %v548
    %v553 = vmul.f32 %v530, %v548
    %v554 = vmul.f32 %v531, %v548
    %v555 = vmul.f32 %v532, %v548
    %v556 = vmul.f32 %v533, %v548
    %v557 = vmul.f32 %v534, %v548
    %v558 = vmul.f32 %v535, %v548
    %v559 = vmul.f32 %v536, %v548
    %v560 = vmul.f32 %v537, %v548
    %v561 = vmul.f32 %v538, %v548
    %v562 = vmul.f32 %v539, %v548
    %v563 = vmul.f32 %v540, %v548
    %v564 = vmul.f32 %v541, %v548
    %v565 = vmul.f32 %v542, %v548
    %v566 = vld [vmem:[#allocation8] sm:$0x1]
    %v568 = vlaneseq
    %v569 = vshrl.u32 %v568, 7
    %v570 = vsub.s32 0, %v569
    %v571 = vrot.slane %v566, %v570
    %v573 = vadd.f32 %v550, %v571
    %v574 = vadd.f32 %v551, %v571
    %v575 = vadd.f32 %v552, %v571
    %v576 = vadd.f32 %v553, %v571
    %v577 = vadd.f32 %v554, %v571
    %v578 = vadd.f32 %v555, %v571
    %v579 = vadd.f32 %v556, %v571
    %v580 = vadd.f32 %v557, %v571
    %v581 = vadd.f32 %v558, %v571
    %v582 = vadd.f32 %v559, %v571
    %v583 = vadd.f32 %v560, %v571
    %v584 = vadd.f32 %v561, %v571
    %v585 = vadd.f32 %v562, %v571
    %v586 = vadd.f32 %v563, %v571
    %v587 = vadd.f32 %v564, %v571
    %v588 = vadd.f32 %v565, %v571
    %v589 = vsub.f32 %v111, %v399
    %v590 = vsub.f32 %v113, %v400
    %v591 = vsub.f32 %v115, %v401
    %v592 = vsub.f32 %v117, %v402
    %v593 = vsub.f32 %v119, %v403
    %v594 = vsub.f32 %v121, %v404
    %v595 = vsub.f32 %v123, %v405
    %v596 = vsub.f32 %v125, %v406
    %v597 = vsub.f32 %v127, %v407
    %v598 = vsub.f32 %v129, %v408
    %v599 = vsub.f32 %v131, %v409
    %v600 = vsub.f32 %v133, %v410
    %v601 = vsub.f32 %v135, %v411
    %v602 = vsub.f32 %v137, %v412
    %v603 = vsub.f32 %v139, %v413
    %v604 = vsub.f32 %v141, %v414
    %v605 = vmul.f32 %v589, %v495
    %v606 = vmul.f32 %v590, %v496
    %v607 = vmul.f32 %v591, %v497
    %v608 = vmul.f32 %v592, %v498
    %v609 = vmul.f32 %v593, %v499
    %v610 = vmul.f32 %v594, %v500
    %v611 = vmul.f32 %v595, %v501
    %v612 = vmul.f32 %v596, %v502
    %v613 = vmul.f32 %v597, %v503
    %v614 = vmul.f32 %v598, %v504
    %v615 = vmul.f32 %v599, %v505
    %v616 = vmul.f32 %v600, %v506
    %v617 = vmul.f32 %v601, %v507
    %v618 = vmul.f32 %v602, %v508
    %v619 = vmul.f32 %v603, %v509
    %v620 = vmul.f32 %v604, %v510
    %v621 = vld [vmem:[#allocation7] sm:$0x1]
    %v623 = vlaneseq
    %v624 = vshrl.u32 %v623, 7
    %v625 = vsub.s32 0, %v624
    %v626 = vrot.slane %v621, %v625
    %v628 = vmul.f32 %v605, %v626
    %v629 = vmul.f32 %v606, %v626
    %v630 = vmul.f32 %v607, %v626
    %v631 = vmul.f32 %v608, %v626
    %v632 = vmul.f32 %v609, %v626
    %v633 = vmul.f32 %v610, %v626
    %v634 = vmul.f32 %v611, %v626
    %v635 = vmul.f32 %v612, %v626
    %v636 = vmul.f32 %v613, %v626
    %v637 = vmul.f32 %v614, %v626
    %v638 = vmul.f32 %v615, %v626
    %v639 = vmul.f32 %v616, %v626
    %v640 = vmul.f32 %v617, %v626
    %v641 = vmul.f32 %v618, %v626
    %v642 = vmul.f32 %v619, %v626
    %v643 = vmul.f32 %v620, %v626
    %v644 = vld [vmem:[#allocation10] sm:$0x1]
    %v646 = vlaneseq
    %v647 = vshrl.u32 %v646, 7
    %v648 = vsub.s32 0, %v647
    %v649 = vrot.slane %v644, %v648
    %v651 = vadd.f32 %v628, %v649
    %v652 = vadd.f32 %v629, %v649
    %v653 = vadd.f32 %v630, %v649
    %v654 = vadd.f32 %v631, %v649
    %v655 = vadd.f32 %v632, %v649
    %v656 = vadd.f32 %v633, %v649
    %v657 = vadd.f32 %v634, %v649
    %v658 = vadd.f32 %v635, %v649
    %v659 = vadd.f32 %v636, %v649
    %v660 = vadd.f32 %v637, %v649
    %v661 = vadd.f32 %v638, %v649
    %v662 = vadd.f32 %v639, %v649
    %v663 = vadd.f32 %v640, %v649
    %v664 = vadd.f32 %v641, %v649
    %v665 = vadd.f32 %v642, %v649
    %v666 = vadd.f32 %v643, %v649
    %v667 = vld [vmem:[#allocation11] sm:$0xff]
    %v668 = vld [vmem:[#allocation13] sm:$0xff]
    %v670 = vsel %vm142, %v651, 0
    %v673 = vsel %vm142, %v652, 0
    %v676 = vsel %vm142, %v653, 0
    %v679 = vsel %vm142, %v654, 0
    %v682 = vsel %vm142, %v655, 0
    %v685 = vsel %vm142, %v656, 0
    %v688 = vsel %vm142, %v657, 0
    %v691 = vsel %vm142, %v658, 0
    %v694 = vsel %vm142, %v659, 0
    %v697 = vsel %vm142, %v660, 0
    %v700 = vsel %vm142, %v661, 0
    %v703 = vsel %vm142, %v662, 0
    %v706 = vsel %vm142, %v663, 0
    %v709 = vsel %vm142, %v664, 0
    %v712 = vsel %vm142, %v665, 0
    %v715 = vsel %vm142, %v666, 0
    %717 = vmatprep.subr.mxu0 0.0
    %718 = vmatpush1.msra.mxu0 %v668
    %719 = vmatprep.subr.mxu0 0.0
    %720 = vmatpush1.msra.mxu0 0.0
    %721 = vmatprep.subr.mxu0 0.0
    %722 = vmatpush1.msra.mxu0 0.0
    %723 = vmatprep.subr.mxu0 0.0
    %724 = vmatpush1.msra.mxu0 0.0
    %725 = vmatprep.subr.mxu0 0.0
    %726 = vmatpush1.msra.mxu0 0.0
    %727 = vmatprep.subr.mxu0 0.0
    %728 = vmatpush1.msra.mxu0 0.0
    %729 = vmatprep.subr.mxu0 0.0
    %730 = vmatpush1.msra.mxu0 0.0
    %731 = vmatprep.subr.mxu0 0.0
    %732 = vmatpush1.msra.mxu0 0.0
    %733 = vmatprep.subr.mxu0 0.0
    %734 = vmatpush1.msra.mxu0 0.0
    %735 = vmatprep.subr.mxu0 0.0
    %736 = vmatpush1.msra.mxu0 0.0
    %737 = vmatprep.subr.mxu0 0.0
    %738 = vmatpush1.msra.mxu0 0.0
    %739 = vmatprep.subr.mxu0 0.0
    %740 = vmatpush1.msra.mxu0 0.0
    %741 = vmatprep.subr.mxu0 0.0
    %742 = vmatpush1.msra.mxu0 0.0
    %743 = vmatprep.subr.mxu0 0.0
    %744 = vmatpush1.msra.mxu0 0.0
    %745 = vmatprep.subr.mxu0 0.0
    %746 = vmatpush1.msra.mxu0 0.0
    %747 = vmatprep.subr.mxu0 0.0
    %748 = vmatpush1.msra.mxu0 0.0
    %749 = vmatprep.subr.mxu0 0.0
    %750 = vmatpush1.msra.mxu0 0.0
    %751 = vmatprep.subr.mxu0 0.0
    %752 = vmatpush1.msra.mxu0 0.0
    %753 = vmatprep.subr.mxu0 0.0
    %754 = vmatpush1.msra.mxu0 0.0
    %755 = vmatprep.subr.mxu0 0.0
    %756 = vmatpush1.msra.mxu0 0.0
    %757 = vmatprep.subr.mxu0 0.0
    %758 = vmatpush1.msra.mxu0 0.0
    %759 = vmatprep.subr.mxu0 0.0
    %760 = vmatpush1.msra.mxu0 0.0
    %761 = vmatprep.subr.mxu0 0.0
    %762 = vmatpush1.msra.mxu0 0.0
    %763 = vmatprep.subr.mxu0 0.0
    %764 = vmatpush1.msra.mxu0 0.0
    %765 = vmatprep.subr.mxu0 0.0
    %766 = vmatpush1.msra.mxu0 0.0
    %767 = vmatprep.subr.mxu0 0.0
    %768 = vmatpush1.msra.mxu0 0.0
    %769 = vmatprep.subr.mxu0 0.0
    %770 = vmatpush1.msra.mxu0 0.0
    %771 = vmatprep.subr.mxu0 0.0
    %772 = vmatpush1.msra.mxu0 0.0
    %773 = vmatprep.subr.mxu0 0.0
    %774 = vmatpush1.msra.mxu0 0.0
    %775 = vmatprep.subr.mxu0 0.0
    %776 = vmatpush1.msra.mxu0 0.0
    %777 = vmatprep.subr.mxu0 0.0
    %778 = vmatpush1.msra.mxu0 0.0
    %779 = vmatprep.subr.mxu0 0.0
    %780 = vmatpush1.msra.mxu0 0.0
    %781 = vmatprep.mubr.f32.mxu0 0.0
    %782 = vmatmul.mubr.f32.gmra.mrb[0].mxu0 %v670
    %v783 = vpop.f32.mrb[0].mxu0
    %v784 = vadd.f32 0.0, %v783
    %v785 = vpop.f32.mrb[0].mxu0
    %786 = vmatprep.mubr.f32.mxu0 0.0
    %787 = vmatmul.mubr.f32.gmra.mrb[0].mxu0 %v673
    %v788 = vpop.f32.mrb[0].mxu0
    %v789 = vadd.f32 0.0, %v788
    %v790 = vpop.f32.mrb[0].mxu0
    %791 = vmatprep.mubr.f32.mxu0 0.0
    %792 = vmatmul.mubr.f32.gmra.mrb[0].mxu0 %v676
    %v793 = vpop.f32.mrb[0].mxu0
    %v794 = vadd.f32 0.0, %v793
    %v795 = vpop.f32.mrb[0].mxu0
    %796 = vmatprep.mubr.f32.mxu0 0.0
    %797 = vmatmul.mubr.f32.gmra.mrb[0].mxu0 %v679
    %v798 = vpop.f32.mrb[0].mxu0
    %v799 = vadd.f32 0.0, %v798
    %v800 = vpop.f32.mrb[0].mxu0
    %801 = vmatprep.mubr.f32.mxu0 0.0
    %802 = vmatmul.mubr.f32.gmra.mrb[0].mxu0 %v682
    %v803 = vpop.f32.mrb[0].mxu0
    %v804 = vadd.f32 0.0, %v803
    %v805 = vpop.f32.mrb[0].mxu0
    %806 = vmatprep.mubr.f32.mxu0 0.0
    %807 = vmatmul.mubr.f32.gmra.mrb[0].mxu0 %v685
    %v808 = vpop.f32.mrb[0].mxu0
    %v809 = vadd.f32 0.0, %v808
    %v810 = vpop.f32.mrb[0].mxu0
    %811 = vmatprep.mubr.f32.mxu0 0.0
    %812 = vmatmul.mubr.f32.gmra.mrb[0].mxu0 %v688
    %v813 = vpop.f32.mrb[0].mxu0
    %v814 = vadd.f32 0.0, %v813
    %v815 = vpop.f32.mrb[0].mxu0
    %816 = vmatprep.mubr.f32.mxu0 0.0
    %817 = vmatmul.mubr.f32.gmra.mrb[0].mxu0 %v691
    %v818 = vpop.f32.mrb[0].mxu0
    %v819 = vadd.f32 0.0, %v818
    %v820 = vpop.f32.mrb[0].mxu0
    %821 = vmatprep.mubr.f32.mxu0 0.0
    %822 = vmatmul.mubr.f32.gmra.mrb[0].mxu0 %v694
    %v823 = vpop.f32.mrb[0].mxu0
    %v824 = vadd.f32 0.0, %v823
    %v825 = vpop.f32.mrb[0].mxu0
    %826 = vmatprep.mubr.f32.mxu0 0.0
    %827 = vmatmul.mubr.f32.gmra.mrb[0].mxu0 %v697
    %v828 = vpop.f32.mrb[0].mxu0
    %v829 = vadd.f32 0.0, %v828
    %v830 = vpop.f32.mrb[0].mxu0
    %831 = vmatprep.mubr.f32.mxu0 0.0
    %832 = vmatmul.mubr.f32.gmra.mrb[0].mxu0 %v700
    %v833 = vpop.f32.mrb[0].mxu0
    %v834 = vadd.f32 0.0, %v833
    %v835 = vpop.f32.mrb[0].mxu0
    %836 = vmatprep.mubr.f32.mxu0 0.0
    %837 = vmatmul.mubr.f32.gmra.mrb[0].mxu0 %v703
    %v838 = vpop.f32.mrb[0].mxu0
    %v839 = vadd.f32 0.0, %v838
    %v840 = vpop.f32.mrb[0].mxu0
    %841 = vmatprep.mubr.f32.mxu0 0.0
    %842 = vmatmul.mubr.f32.gmra.mrb[0].mxu0 %v706
    %v843 = vpop.f32.mrb[0].mxu0
    %v844 = vadd.f32 0.0, %v843
    %v845 = vpop.f32.mrb[0].mxu0
    %846 = vmatprep.mubr.f32.mxu0 0.0
    %847 = vmatmul.mubr.f32.gmra.mrb[0].mxu0 %v709
    %v848 = vpop.f32.mrb[0].mxu0
    %v849 = vadd.f32 0.0, %v848
    %v850 = vpop.f32.mrb[0].mxu0
    %851 = vmatprep.mubr.f32.mxu0 0.0
    %852 = vmatmul.mubr.f32.gmra.mrb[0].mxu0 %v712
    %v853 = vpop.f32.mrb[0].mxu0
    %v854 = vadd.f32 0.0, %v853
    %v855 = vpop.f32.mrb[0].mxu0
    %856 = vmatprep.mubr.f32.mxu0 0.0
    %857 = vmatmul.mubr.f32.gmra.mrb[0].mxu0 %v715
    %v858 = vpop.f32.mrb[0].mxu0
    %v859 = vadd.f32 0.0, %v858
    %v860 = vpop.f32.mrb[0].mxu0
    %861 = vdwg.mxu0
    %v863 = vsel %vm142, %v573, 0
    %v866 = vsel %vm142, %v574, 0
    %v869 = vsel %vm142, %v575, 0
    %v872 = vsel %vm142, %v576, 0
    %v875 = vsel %vm142, %v577, 0
    %v878 = vsel %vm142, %v578, 0
    %v881 = vsel %vm142, %v579, 0
    %v884 = vsel %vm142, %v580, 0
    %v887 = vsel %vm142, %v581, 0
    %v890 = vsel %vm142, %v582, 0
    %v893 = vsel %vm142, %v583, 0
    %v896 = vsel %vm142, %v584, 0
    %v899 = vsel %vm142, %v585, 0
    %v902 = vsel %vm142, %v586, 0
    %v905 = vsel %vm142, %v587, 0
    %v908 = vsel %vm142, %v588, 0
    %910 = vmatprep.subr.mxu0 0.0
    %911 = vmatpush1.msra.mxu0 %v667
    %912 = vmatprep.subr.mxu0 0.0
    %913 = vmatpush1.msra.mxu0 0.0
    %914 = vmatprep.subr.mxu0 0.0
    %915 = vmatpush1.msra.mxu0 0.0
    %916 = vmatprep.subr.mxu0 0.0
    %917 = vmatpush1.msra.mxu0 0.0
    %918 = vmatprep.subr.mxu0 0.0
    %919 = vmatpush1.msra.mxu0 0.0
    %920 = vmatprep.subr.mxu0 0.0
    %921 = vmatpush1.msra.mxu0 0.0
    %922 = vmatprep.subr.mxu0 0.0
    %923 = vmatpush1.msra.mxu0 0.0
    %924 = vmatprep.subr.mxu0 0.0
    %925 = vmatpush1.msra.mxu0 0.0
    %926 = vmatprep.subr.mxu0 0.0
    %927 = vmatpush1.msra.mxu0 0.0
    %928 = vmatprep.subr.mxu0 0.0
    %929 = vmatpush1.msra.mxu0 0.0
    %930 = vmatprep.subr.mxu0 0.0
    %931 = vmatpush1.msra.mxu0 0.0
    %932 = vmatprep.subr.mxu0 0.0
    %933 = vmatpush1.msra.mxu0 0.0
    %934 = vmatprep.subr.mxu0 0.0
    %935 = vmatpush1.msra.mxu0 0.0
    %936 = vmatprep.subr.mxu0 0.0
    %937 = vmatpush1.msra.mxu0 0.0
    %938 = vmatprep.subr.mxu0 0.0
    %939 = vmatpush1.msra.mxu0 0.0
    %940 = vmatprep.subr.mxu0 0.0
    %941 = vmatpush1.msra.mxu0 0.0
    %942 = vmatprep.subr.mxu0 0.0
    %943 = vmatpush1.msra.mxu0 0.0
    %944 = vmatprep.subr.mxu0 0.0
    %945 = vmatpush1.msra.mxu0 0.0
    %946 = vmatprep.subr.mxu0 0.0
    %947 = vmatpush1.msra.mxu0 0.0
    %948 = vmatprep.subr.mxu0 0.0
    %949 = vmatpush1.msra.mxu0 0.0
    %950 = vmatprep.subr.mxu0 0.0
    %951 = vmatpush1.msra.mxu0 0.0
    %952 = vmatprep.subr.mxu0 0.0
    %953 = vmatpush1.msra.mxu0 0.0
    %954 = vmatprep.subr.mxu0 0.0
    %955 = vmatpush1.msra.mxu0 0.0
    %956 = vmatprep.subr.mxu0 0.0
    %957 = vmatpush1.msra.mxu0 0.0
    %958 = vmatprep.subr.mxu0 0.0
    %959 = vmatpush1.msra.mxu0 0.0
    %960 = vmatprep.subr.mxu0 0.0
    %961 = vmatpush1.msra.mxu0 0.0
    %962 = vmatprep.subr.mxu0 0.0
    %963 = vmatpush1.msra.mxu0 0.0
    %964 = vmatprep.subr.mxu0 0.0
    %965 = vmatpush1.msra.mxu0 0.0
    %966 = vmatprep.subr.mxu0 0.0
    %967 = vmatpush1.msra.mxu0 0.0
    %968 = vmatprep.subr.mxu0 0.0
    %969 = vmatpush1.msra.mxu0 0.0
    %970 = vmatprep.subr.mxu0 0.0
    %971 = vmatpush1.msra.mxu0 0.0
    %972 = vmatprep.subr.mxu0 0.0
    %973 = vmatpush1.msra.mxu0 0.0
    %974 = vmatprep.mubr.f32.mxu0 0.0
    %975 = vmatmul.mubr.f32.gmra.mrb[0].mxu0 %v863
    %v976 = vpop.f32.mrb[0].mxu0
    %v977 = vadd.f32 %v784, %v976
    %v978 = vpop.f32.mrb[0].mxu0
    %979 = vmatprep.mubr.f32.mxu0 0.0
    %980 = vmatmul.mubr.f32.gmra.mrb[0].mxu0 %v866
    %v981 = vpop.f32.mrb[0].mxu0
    %v982 = vadd.f32 %v789, %v981
    %v983 = vpop.f32.mrb[0].mxu0
    %984 = vmatprep.mubr.f32.mxu0 0.0
    %985 = vmatmul.mubr.f32.gmra.mrb[0].mxu0 %v869
    %v986 = vpop.f32.mrb[0].mxu0
    %v987 = vadd.f32 %v794, %v986
    %v988 = vpop.f32.mrb[0].mxu0
    %989 = vmatprep.mubr.f32.mxu0 0.0
    %990 = vmatmul.mubr.f32.gmra.mrb[0].mxu0 %v872
    %v991 = vpop.f32.mrb[0].mxu0
    %v992 = vadd.f32 %v799, %v991
    %v993 = vpop.f32.mrb[0].mxu0
    %994 = vmatprep.mubr.f32.mxu0 0.0
    %995 = vmatmul.mubr.f32.gmra.mrb[0].mxu0 %v875
    %v996 = vpop.f32.mrb[0].mxu0
    %v997 = vadd.f32 %v804, %v996
    %v998 = vpop.f32.mrb[0].mxu0
    %999 = vmatprep.mubr.f32.mxu0 0.0
    %1000 = vmatmul.mubr.f32.gmra.mrb[0].mxu0 %v878
    %v1001 = vpop.f32.mrb[0].mxu0
    %v1002 = vadd.f32 %v809, %v1001
    %v1003 = vpop.f32.mrb[0].mxu0
    %1004 = vmatprep.mubr.f32.mxu0 0.0
    %1005 = vmatmul.mubr.f32.gmra.mrb[0].mxu0 %v881
    %v1006 = vpop.f32.mrb[0].mxu0
    %v1007 = vadd.f32 %v814, %v1006
    %v1008 = vpop.f32.mrb[0].mxu0
    %1009 = vmatprep.mubr.f32.mxu0 0.0
    %1010 = vmatmul.mubr.f32.gmra.mrb[0].mxu0 %v884
    %v1011 = vpop.f32.mrb[0].mxu0
    %v1012 = vadd.f32 %v819, %v1011
    %v1013 = vpop.f32.mrb[0].mxu0
    %1014 = vmatprep.mubr.f32.mxu0 0.0
    %1015 = vmatmul.mubr.f32.gmra.mrb[0].mxu0 %v887
    %v1016 = vpop.f32.mrb[0].mxu0
    %v1017 = vadd.f32 %v824, %v1016
    %v1018 = vpop.f32.mrb[0].mxu0
    %1019 = vmatprep.mubr.f32.mxu0 0.0
    %1020 = vmatmul.mubr.f32.gmra.mrb[0].mxu0 %v890
    %v1021 = vpop.f32.mrb[0].mxu0
    %v1022 = vadd.f32 %v829, %v1021
    %v1023 = vpop.f32.mrb[0].mxu0
    %1024 = vmatprep.mubr.f32.mxu0 0.0
    %1025 = vmatmul.mubr.f32.gmra.mrb[0].mxu0 %v893
    %v1026 = vpop.f32.mrb[0].mxu0
    %v1027 = vadd.f32 %v834, %v1026
    %v1028 = vpop.f32.mrb[0].mxu0
    %1029 = vmatprep.mubr.f32.mxu0 0.0
    %1030 = vmatmul.mubr.f32.gmra.mrb[0].mxu0 %v896
    %v1031 = vpop.f32.mrb[0].mxu0
    %v1032 = vadd.f32 %v839, %v1031
    %v1033 = vpop.f32.mrb[0].mxu0
    %1034 = vmatprep.mubr.f32.mxu0 0.0
    %1035 = vmatmul.mubr.f32.gmra.mrb[0].mxu0 %v899
    %v1036 = vpop.f32.mrb[0].mxu0
    %v1037 = vadd.f32 %v844, %v1036
    %v1038 = vpop.f32.mrb[0].mxu0
    %1039 = vmatprep.mubr.f32.mxu0 0.0
    %1040 = vmatmul.mubr.f32.gmra.mrb[0].mxu0 %v902
    %v1041 = vpop.f32.mrb[0].mxu0
    %v1042 = vadd.f32 %v849, %v1041
    %v1043 = vpop.f32.mrb[0].mxu0
    %1044 = vmatprep.mubr.f32.mxu0 0.0
    %1045 = vmatmul.mubr.f32.gmra.mrb[0].mxu0 %v905
    %v1046 = vpop.f32.mrb[0].mxu0
    %v1047 = vadd.f32 %v854, %v1046
    %v1048 = vpop.f32.mrb[0].mxu0
    %1049 = vmatprep.mubr.f32.mxu0 0.0
    %1050 = vmatmul.mubr.f32.gmra.mrb[0].mxu0 %v908
    %v1051 = vpop.f32.mrb[0].mxu0
    %v1052 = vadd.f32 %v859, %v1051
    %v1053 = vpop.f32.mrb[0].mxu0
    %1054 = vdwg.mxu0
    %1055 = vst.msk [vmem:[#allocation14] sm:$0xff] %vm142, %v977
    %1056 = vst.msk [vmem:[#allocation14 + $0x8] sm:$0xff] %vm142, %v982
    %1057 = vst.msk [vmem:[#allocation14 + $0x10] sm:$0xff] %vm142, %v987
    %1058 = vst.msk [vmem:[#allocation14 + $0x18] sm:$0xff] %vm142, %v992
    %1059 = vst.msk [vmem:[#allocation14 + $0x20] sm:$0xff] %vm142, %v997
    %1060 = vst.msk [vmem:[#allocation14 + $0x28] sm:$0xff] %vm142, %v1002
    %1061 = vst.msk [vmem:[#allocation14 + $0x30] sm:$0xff] %vm142, %v1007
    %1062 = vst.msk [vmem:[#allocation14 + $0x38] sm:$0xff] %vm142, %v1012
    %1063 = vst.msk [vmem:[#allocation14 + $0x40] sm:$0xff] %vm142, %v1017
    %1064 = vst.msk [vmem:[#allocation14 + $0x48] sm:$0xff] %vm142, %v1022
    %1065 = vst.msk [vmem:[#allocation14 + $0x50] sm:$0xff] %vm142, %v1027
    %1066 = vst.msk [vmem:[#allocation14 + $0x58] sm:$0xff] %vm142, %v1032
    %1067 = vst.msk [vmem:[#allocation14 + $0x60] sm:$0xff] %vm142, %v1037
    %1068 = vst.msk [vmem:[#allocation14 + $0x68] sm:$0xff] %vm142, %v1042
    %1069 = vst.msk [vmem:[#allocation14 + $0x70] sm:$0xff] %vm142, %v1047
    %1070 = vst.msk [vmem:[#allocation14 + $0x78] sm:$0xff] %vm142, %v1052
    // Predicated region
    $region58: #{patch_merging_2d.1} parent=1 // pred_check
      _
    $region59: #{patch_merging_2d.1} parent=1 // pred_check_branch
      %1072 = sbr.rel (0) target = $region61
    $region60: #{patch_merging_2d.1} parent=1 // pred_region
      %s1074 = ssub.s32 2048, 2048
      %1075 = vsyncadd [#allocation4], %s1074
      %s1076 = sshll.u32 [#allocation14], 4
      %s1077 = int_to_ptr.vmem [resolvable:$true] %s1076
      %1082 = dma.vmem_to_hbm [thread:$0]  %s1077, 2048, %s7, [#allocation4], 128, 128, 8
    $region61: #{patch_merging_2d.1} parent=1 // pred_fallthru
      _
    // Predicated region
    $region62: #{patch_merging_2d.1} parent=1 // pred_check
      _
    $region63: #{patch_merging_2d.1} parent=1 // pred_check_branch
      %1084 = sbr.rel (0) target = $region65
    $region64: #{patch_merging_2d.1} parent=1 // pred_region
      %1085 = dma.done [#allocation4], 2048
    $region65: #{patch_merging_2d.1} parent=1 // pred_fallthru
      _
    %1086 = vsyncpa [#allocation3], 1
    %1087 = vsyncpa [#allocation6], 1
    %1088 = vsyncpa [#allocation9], 1
    %1089 = vsyncpa [#allocation12], 1
    %1090 = vsyncpa [#allocation4], 1

</llo_original>
